<compile_context>
chip_gen: v5e
topology: v5e:2x2
jax: 0.10.0
libtpu: 0.0.40
codegen_flags: <defaults>
</compile_context>

<pallas_src>
import jax
import jax.numpy as jnp
from jax.experimental import pallas as pl
from jax.experimental.pallas import tpu as pltpu


def _cdiv(a, b):
    return -(-a // b)


def _round_up(a, b):
    return _cdiv(a, b) * b


def fused_linear_kernel(x_ref, w_ref, b_ref, o_ref):
    # x_ref: (TM, Dp_in) streaming tile
    # w_ref: (Dp_in, Dp_out) block-diagonal fused weight, VMEM-resident
    # b_ref: (1, Dp_out) tiled fused bias, VMEM-resident
    y = jnp.dot(x_ref[...], w_ref[...], preferred_element_type=jnp.float32)
    o_ref[...] = (y + b_ref[...]).astype(o_ref.dtype)


def dummy_model_forward(x, w1, b1, w2, b2, *, rows_per_pack=12, block_rows=1024):
    """Forward of DummyModel: fc2(fc1(x)). Weights in PyTorch (out, in) layout, biases (out,)."""
    B, D_in = x.shape
    D_out = w2.shape[0]
    R = rows_per_pack
    Dp_in = R * D_in      # 120: fits one 128-lane group, no lane padding in HBM
    Dp_out = R * D_out    # 120

    # ---- Fold the two affine layers (exact: no nonlinearity between them) ----
    # NOTE: if DummyModel ever gains an activation between fc1 and fc2, this
    # fold becomes invalid and the kernel must apply the layers separately.
    w_fused = w1.T @ w2.T                              # (D_in, D_out), (in, out)
    b_fused = (b1 @ w2.T + b2).reshape(1, D_out)       # (1, D_out)

    # ---- Block-diagonal fused weight / tiled bias for row-packing ------------
    eye_r = jnp.eye(R, dtype=w_fused.dtype)
    w_blk = jnp.kron(eye_r, w_fused)                   # (Dp_in, Dp_out), block-diag
    b_blk = jnp.tile(b_fused, (1, R))                  # (1, Dp_out)

    # ---- Pack rows and tile the packed-batch dimension -----------------------
    rows = max(1, _cdiv(B, R))                         # packed rows needed
    rows8 = max(8, _round_up(rows, 8))                 # sublane multiple
    TM = min(block_rows, rows8)
    # v7x megacore: prefer >= 2 grid steps when there is enough work.
    if TM == rows8 and rows8 >= 16:
        TM = _round_up(rows8 // 2, 8)
    rows_pad = _round_up(rows8, TM)
    B_pad = rows_pad * R                               # pad waste bounded by TM*R-1 rows

    x_pad = x if B_pad == B else jnp.pad(x, ((0, B_pad - B), (0, 0)))
    x_packed = x_pad.reshape(rows_pad, Dp_in)          # contiguous -> free reshape

    grid = (rows_pad // TM,)

    out_packed = pl.pallas_call(
        fused_linear_kernel,
        out_shape=jax.ShapeDtypeStruct((rows_pad, Dp_out), x.dtype),
        grid_spec=pltpu.PrefetchScalarGridSpec(
            num_scalar_prefetch=0,
            grid=grid,
            in_specs=[
                # x tile streams (double-buffered by the BlockSpec pipeline).
                pl.BlockSpec((TM, Dp_in), lambda i: (i, 0)),
                # Fused block-diagonal weight: resident across grid steps.
                pl.BlockSpec((Dp_in, Dp_out), lambda i: (0, 0)),
                # Fused bias: resident.
                pl.BlockSpec((1, Dp_out), lambda i: (0, 0)),
            ],
            out_specs=pl.BlockSpec((TM, Dp_out), lambda i: (i, 0)),
        ),
        compiler_params=pltpu.CompilerParams(
            dimension_semantics=("parallel",),
        ),
    )(x_packed, w_blk, b_blk)

    # Unpack: packed column block r*D_out:(r+1)*D_out is logical row r's output,
    # so a contiguous reshape recovers (B_pad, D_out) in row order.
    out = out_packed.reshape(B_pad, D_out)
    return out[:B] if B_pad != B else out


def init_params(key):
    # Deterministic init mimicking nn.Linear's uniform(-1/sqrt(fan_in), 1/sqrt(fan_in)).
    k1, k2, k3, k4 = jax.random.split(key, 4)
    bound = 1.0 / jnp.sqrt(10.0)
    w1 = jax.random.uniform(k1, (10, 10), jnp.float32, -bound, bound)
    b1 = jax.random.uniform(k2, (10,), jnp.float32, -bound, bound)
    w2 = jax.random.uniform(k3, (10, 10), jnp.float32, -bound, bound)
    b2 = jax.random.uniform(k4, (10,), jnp.float32, -bound, bound)
    return w1, b1, w2, b2


if __name__ == "__main__":
    key = jax.random.PRNGKey(0)
    pk, xk = jax.random.split(key)
    w1, b1, w2, b2 = init_params(pk)

    batch = 8
    x = jax.random.normal(xk, (batch, 10), jnp.float32)

    out = dummy_model_forward(x, w1, b1, w2, b2)
    out = jax.block_until_ready(out)

    # Reference in plain JAX (same math as the PyTorch forward, unfused).
    ref = (x @ w1.T + b1) @ w2.T + b2
    assert out.shape == (batch, 10)
    assert jnp.allclose(out, ref, atol=1e-4, rtol=1e-4), float(jnp.abs(out - ref).max())

    print("KERNEL_OK")
</pallas_src>

<mosaic_0001>
module attributes {stable_mosaic.version = 11 : i64} {
  func.func @fused_linear_kernel(%arg0: i32, %arg1: memref<8x120xf32, #tpu.memory_space<vmem>>, %arg2: memref<120x120xf32, #tpu.memory_space<vmem>>, %arg3: memref<1x120xf32, #tpu.memory_space<vmem>>, %arg4: memref<8x120xf32, #tpu.memory_space<vmem>>) attributes {dimension_semantics = [#tpu.dimension_semantics<parallel>], iteration_bounds = array<i64: 1>, scalar_prefetch = 0 : i64, scratch_operands = 0 : i64, tpu.core_type = #tpu.core_type<tc>, window_params = [{transform_indices = @transform_0, window_bounds = array<i64: 8, 120>}, {pipeline_mode = #tpu.pipeline_mode<synchronous>, transform_indices = @transform_1, window_bounds = array<i64: 120, 120>}, {pipeline_mode = #tpu.pipeline_mode<synchronous>, transform_indices = @transform_2, window_bounds = array<i64: 1, 120>}, {transform_indices = @transform_3, window_bounds = array<i64: 8, 120>}]} {
    %c0 = arith.constant 0 : index
    %c0_0 = arith.constant 0 : index
    %0 = vector.load %arg1[%c0, %c0_0] : memref<8x120xf32, #tpu.memory_space<vmem>>, vector<8x120xf32>
    %c0_1 = arith.constant 0 : index
    %c0_2 = arith.constant 0 : index
    %1 = vector.load %arg2[%c0_1, %c0_2] : memref<120x120xf32, #tpu.memory_space<vmem>>, vector<120x120xf32>
    %cst = arith.constant dense<0.000000e+00> : vector<8x120xf32>
    %2 = tpu.matmul %0, %1, %cst {dimension_numbers = #tpu.dot_dimension_numbers<[1], [0], [0], [1], [0, 0, 1, 1], [], []>} : vector<8x120xf32>, vector<120x120xf32>, vector<8x120xf32> -> vector<8x120xf32>
    %c0_3 = arith.constant 0 : index
    %c0_4 = arith.constant 0 : index
    %3 = vector.load %arg3[%c0_3, %c0_4] : memref<1x120xf32, #tpu.memory_space<vmem>>, vector<1x120xf32>
    %4 = vector.broadcast %3 : vector<1x120xf32> to vector<8x120xf32>
    %5 = arith.addf %2, %4 : vector<8x120xf32>
    %c0_5 = arith.constant 0 : index
    %c0_6 = arith.constant 0 : index
    %6 = vector.load %arg4[%c0_5, %c0_6] : memref<8x120xf32, #tpu.memory_space<vmem>>, vector<8x120xf32>
    tpu.vector_store %arg4[%c0_5, %c0_6], %5 {strides = array<i32>} : memref<8x120xf32, #tpu.memory_space<vmem>>, vector<8x120xf32>,
    return
  }
  func.func @transform_0(%arg0: i32) -> (i32, i32) {
    %c0_i32 = arith.constant 0 : i32
    %c0_i32_0 = arith.constant 0 : i32
    return %arg0, %c0_i32 : i32, i32
  }
  func.func @transform_1(%arg0: i32) -> (i32, i32) {
    %c0_i32 = arith.constant 0 : i32
    %c0_i32_0 = arith.constant 0 : i32
    %c0_i32_1 = arith.constant 0 : i32
    return %c0_i32, %c0_i32_0 : i32, i32
  }
  func.func @transform_2(%arg0: i32) -> (i32, i32) {
    %c0_i32 = arith.constant 0 : i32
    %c0_i32_0 = arith.constant 0 : i32
    %c0_i32_1 = arith.constant 0 : i32
    return %c0_i32, %c0_i32_0 : i32, i32
  }
  func.func @transform_3(%arg0: i32) -> (i32, i32) {
    %c0_i32 = arith.constant 0 : i32
    %c0_i32_0 = arith.constant 0 : i32
    return %arg0, %c0_i32 : i32, i32
  }
}

</mosaic_0001>

<llo_original>
// kernel: tpu_custom_call.1
$region0: #{tpu_custom_call.1}
  #allocation0 [shape = 'u32[]', space=smem, size = 0x4, offset = 0x4, fixed_abs, tag = 'smem constant byte address 0x4 - core index']
  #allocation1 [shape = 'u32[72,128]{1,0:T(1,128)}', space=vmem, size = 0x9000, scoped, tag = 'internal scratch']
  %s0 = inlined_call_operand.hbm [shape: f32[8,120], index: 0, kind: input, shape index: {}]
  %s1 = inlined_call_operand.hbm [shape: f32[120,120], index: 1, kind: input, shape index: {}]
  %s2 = inlined_call_operand.vmem [shape: f32[1,120], index: 2, kind: input, shape index: {}]
  %s3 = inlined_call_operand.hbm [shape: f32[8,120], index: 3, kind: output, shape index: {}]
  %s4 = sld [smem:[#allocation0]]
  $region30: #{tpu_custom_call.1} parent=0
    _
  %s6 = ssub.s32 1, %s4
  %s7 = scalar_select 0, %s6, %s4
  $region1: #{tpu_custom_call.1} parent=0
    #allocation2 [shape = 'u8[4096]{0}', space=vmem, size = 0x1000, scoped, tag = 'input window, operand 0, single buffered']
    #allocation3 [shape = 's32[1]{0}', space=sflag, size = 0x4, scoped, tag = 'scoped memory for tpu_custom_call.1']
    #allocation4 [shape = 's32[1]{0}', space=sflag, size = 0x4, scoped, tag = 'scoped memory for tpu_custom_call.1']
    #allocation5 [shape = 'u8[61440]{0}', space=vmem, size = 0xf000, scoped, tag = 'input window, operand 1, single buffered']
    #allocation6 [shape = 's32[1]{0}', space=sflag, size = 0x4, scoped, tag = 'scoped memory for tpu_custom_call.1']
    #allocation7 [shape = 'u8[4096]{0}', space=vmem, size = 0x1000, scoped, tag = 'output window, operand 0, single buffered']
    %8 = vsyncpa [#allocation3], 0
    %9 = vsyncpa [#allocation6], 0
    %10 = vsyncpa [#allocation4], 0
    // Predicated region
    $region2: #{tpu_custom_call.1} parent=1 // pred_check
      _
    $region3: #{tpu_custom_call.1} parent=1 // pred_check_branch
      %12 = sbr.rel (0) target = $region5
    $region4: #{tpu_custom_call.1} parent=1 // pred_region
      %14 = vsyncadd [#allocation3], 0
      %s16 = sshll.u32 %s0, 4
      %s17 = int_to_ptr.hbm [resolvable:$true] %s16
      %s18 = sshll.u32 [#allocation2], 4
      %s19 = int_to_ptr.vmem [resolvable:$true] %s18
      %21 = dma.hbm_to_vmem [thread:$0]  %s17, 128, %s19, [#allocation3]
    $region5: #{tpu_custom_call.1} parent=1 // pred_fallthru
      _
    // Predicated region
    $region6: #{tpu_custom_call.1} parent=1 // pred_check
      _
    $region7: #{tpu_custom_call.1} parent=1 // pred_check_branch
      %23 = sbr.rel (0) target = $region9
    $region8: #{tpu_custom_call.1} parent=1 // pred_region
      %25 = vsyncadd [#allocation6], 0
      %s26 = sshll.u32 %s1, 4
      %s27 = int_to_ptr.hbm [resolvable:$true] %s26
      %s28 = sshll.u32 [#allocation5], 4
      %s29 = int_to_ptr.vmem [resolvable:$true] %s28
      %34 = dma.hbm_to_vmem [thread:$0]  %s27, 1920, %s29, [#allocation6], 128, 128, 8
    $region9: #{tpu_custom_call.1} parent=1 // pred_fallthru
      _
    // Predicated region
    $region10: #{tpu_custom_call.1} parent=1 // pred_check
      _
    $region11: #{tpu_custom_call.1} parent=1 // pred_check_branch
      %36 = sbr.rel (0) target = $region13
    $region12: #{tpu_custom_call.1} parent=1 // pred_region
      _
    $region13: #{tpu_custom_call.1} parent=1 // pred_fallthru
      _
    // Predicated region
    $region14: #{tpu_custom_call.1} parent=1 // pred_check
      _
    $region15: #{tpu_custom_call.1} parent=1 // pred_check_branch
      %38 = sbr.rel (0) target = $region17
    $region16: #{tpu_custom_call.1} parent=1 // pred_region
      %40 = dma.done [#allocation3], 128
    $region17: #{tpu_custom_call.1} parent=1 // pred_fallthru
      _
    // Predicated region
    $region18: #{tpu_custom_call.1} parent=1 // pred_check
      _
    $region19: #{tpu_custom_call.1} parent=1 // pred_check_branch
      %42 = sbr.rel (0) target = $region21
    $region20: #{tpu_custom_call.1} parent=1 // pred_region
      %44 = dma.done [#allocation6], 1920
    $region21: #{tpu_custom_call.1} parent=1 // pred_fallthru
      _
    %v45 = vld [vmem:[#allocation2] sm:$0xff]
    %v46 = vld [vmem:[#allocation5] sm:$0xff]
    %v47 = vld [vmem:[#allocation5 + $0x8] sm:$0xff]
    %v48 = vld [vmem:[#allocation5 + $0x10] sm:$0xff]
    %v49 = vld [vmem:[#allocation5 + $0x18] sm:$0xff]
    %v50 = vld [vmem:[#allocation5 + $0x20] sm:$0xff]
    %v51 = vld [vmem:[#allocation5 + $0x28] sm:$0xff]
    %v52 = vld [vmem:[#allocation5 + $0x30] sm:$0xff]
    %v53 = vld [vmem:[#allocation5 + $0x38] sm:$0xff]
    %v54 = vld [vmem:[#allocation5 + $0x40] sm:$0xff]
    %v55 = vld [vmem:[#allocation5 + $0x48] sm:$0xff]
    %v56 = vld [vmem:[#allocation5 + $0x50] sm:$0xff]
    %v57 = vld [vmem:[#allocation5 + $0x58] sm:$0xff]
    %v58 = vld [vmem:[#allocation5 + $0x60] sm:$0xff]
    %v59 = vld [vmem:[#allocation5 + $0x68] sm:$0xff]
    %v60 = vld [vmem:[#allocation5 + $0x70] sm:$0xff]
    %v61 = vld [vmem:[%s2] sm:$0x1]
    %v63 = vperm.slane %v61, 0
    %vm65 = vcmask 982016
    %v67 = vsel %vm65, %v45, 0
    %69 = vmatpush.msra.mxu0 0.0
    %70 = vmatpush.msra.mxu0 %v60
    %71 = vmatpush.msra.mxu0 %v59
    %72 = vmatpush.msra.mxu0 %v58
    %73 = vmatpush.msra.mxu0 %v57
    %74 = vmatpush.msra.mxu0 %v56
    %75 = vmatpush.msra.mxu0 %v55
    %76 = vmatpush.msra.mxu0 %v54
    %77 = vmatpush.msra.mxu0 %v53
    %78 = vmatpush.msra.mxu0 %v52
    %79 = vmatpush.msra.mxu0 %v51
    %80 = vmatpush.msra.mxu0 %v50
    %81 = vmatpush.msra.mxu0 %v49
    %82 = vmatpush.msra.mxu0 %v48
    %83 = vmatpush.msra.mxu0 %v47
    %84 = vmatpush.msra.mxu0 %v46
    %85 = vmatmul.f32.gmra.mxu0 %v67
    %v86 = vpop.f32.mrf.mxu0
    %v87 = vadd.f32 %v63, %v86
    %88 = vdwg.mxu0
    %89 = vst.msk [vmem:[#allocation7] sm:$0xff] %vm65, %v87
    // Predicated region
    $region22: #{tpu_custom_call.1} parent=1 // pred_check
      _
    $region23: #{tpu_custom_call.1} parent=1 // pred_check_branch
      %91 = sbr.rel (0) target = $region25
    $region24: #{tpu_custom_call.1} parent=1 // pred_region
      %93 = vsyncadd [#allocation4], 0
      %s95 = sshll.u32 [#allocation7], 4
      %s96 = int_to_ptr.vmem [resolvable:$true] %s95
      %s97 = sshll.u32 %s3, 4
      %s98 = int_to_ptr.hbm [resolvable:$true] %s97
      %100 = dma.vmem_to_hbm [thread:$0]  %s96, 128, %s98, [#allocation4]
    $region25: #{tpu_custom_call.1} parent=1 // pred_fallthru
      _
    // Predicated region
    $region26: #{tpu_custom_call.1} parent=1 // pred_check
      _
    $region27: #{tpu_custom_call.1} parent=1 // pred_check_branch
      %102 = sbr.rel (0) target = $region29
    $region28: #{tpu_custom_call.1} parent=1 // pred_region
      %104 = dma.done [#allocation4], 128
    $region29: #{tpu_custom_call.1} parent=1 // pred_fallthru
      _
    %105 = vsyncpa [#allocation3], 1
    %106 = vsyncpa [#allocation6], 1
    %107 = vsyncpa [#allocation4], 1

</llo_original>
